<compile_context>
chip_gen: v5e
topology: v5e:2x2
jax: 0.10.0
libtpu: 0.0.40
codegen_flags: <defaults>
</compile_context>

<pallas_src>
import jax
import jax.numpy as jnp
from jax.experimental import pallas as pl
from jax.experimental.pallas import tpu as pltpu


def _copy_kernel(x_ref, o_ref):
    # Pure pass-through of the current tile.
    o_ref[...] = x_ref[...]


# Lane-width candidates (all multiples of 128), preferred large-to-small.
_LANE_CANDIDATES = (2048, 1024, 512, 256, 128)

# Per-tile byte budget.  in + out are each double-buffered -> 4x this must
# stay well under the most conservative (v5e) 16 MiB default scoped VMEM.
_TILE_BYTE_BUDGET = 3 * 1024 * 1024


def _sublane_pack(itemsize):
    # f32 -> 8 rows / packed sublane group, bf16 -> 16, int8 -> 32.
    return max(8, (8 * 4) // max(1, itemsize))


def wrapper_forward(x):
    """Identity forward (Wrapper.forward).  Implemented as an aliased,
    lane-dense, byte-sized tiled Pallas copy."""
    orig_shape = x.shape
    orig_dtype = x.dtype

    total = 1
    for d in orig_shape:
        total *= d
    if total == 0:
        return x  # nothing to move for empty arrays

    itemsize = jnp.dtype(orig_dtype).itemsize
    pack = _sublane_pack(itemsize)

    # ---- choose a lane-dense, sublane-friendly 2D layout --------------------
    lane = None
    lane_any = None
    for cand in _LANE_CANDIDATES:
        if total % cand == 0:
            if lane_any is None:
                lane_any = cand
            if (total // cand) % pack == 0:
                lane = cand  # rows will also be sublane-pack aligned
                break
    if lane is None:
        lane = lane_any

    if lane is None:
        # Total size not a multiple of 128: fall back to a single full-array
        # block (block_shape == full dims always satisfies the (8,128) rule).
        if x.ndim >= 2:
            x2 = x.reshape(total // orig_shape[-1], orig_shape[-1])
        else:
            x2 = x.reshape(1, total)
        rows, cols = x2.shape
        tile_r = rows
    else:
        rows = total // lane
        cols = lane
        x2 = x.reshape(rows, cols)

        row_bytes = cols * itemsize
        max_rows = max(1, _TILE_BYTE_BUDGET // row_bytes)
        max_rows = max(pack, (max_rows // pack) * pack)  # sublane-aligned cap

        if rows <= max_rows:
            # Whole array fits in one tile.
            tile_r = rows
            # If the copy is big enough, split into >=2 tiles so both
            # TensorCores on v7x get a shard via dimension_semantics.
            if total * itemsize >= (2 * 1024 * 1024) and rows % (2 * pack) == 0:
                tile_r = rows // 2
        else:
            # Largest sublane-aligned divisor of `rows` under the byte cap.
            tile_r = None
            r = max_rows
            while r >= pack:
                if rows % r == 0:
                    tile_r = r
                    break
                r -= pack
            if tile_r is None:
                # No aligned divisor: any divisor under the cap, else one
                # full-array block (still layout-legal).
                r = max_rows
                while r >= 1:
                    if rows % r == 0:
                        tile_r = r
                        break
                    r -= 1
                if tile_r is None or (tile_r % 8 != 0 and tile_r != rows):
                    tile_r = rows

    grid = (x2.shape[0] // tile_r,)

    out2 = pl.pallas_call(
        _copy_kernel,
        out_shape=jax.ShapeDtypeStruct(x2.shape, orig_dtype),
        grid=grid,
        in_specs=[pl.BlockSpec((tile_r, x2.shape[1]), lambda i: (i, 0))],
        out_specs=pl.BlockSpec((tile_r, x2.shape[1]), lambda i: (i, 0)),
        # Identity: let the output buffer alias the input buffer so no extra
        # HBM allocation / traffic is required beyond what XLA must keep live.
        input_output_aliases={0: 0},
        compiler_params=pltpu.CompilerParams(
            dimension_semantics=("parallel",),
        ),
    )(x2)

    return out2.reshape(orig_shape)


if __name__ == "__main__":
    key = jax.random.PRNGKey(0)
    # Small conv-style input: NCHW = (2, 4, 16, 16)
    x = jax.random.normal(key, (2, 4, 16, 16), dtype=jnp.float32)

    y = wrapper_forward(x)
    y = jax.block_until_ready(y)

    assert y.shape == x.shape
    assert y.dtype == x.dtype
    assert bool(jnp.all(y == x))

    print("KERNEL_OK")
</pallas_src>

<mosaic_0001>
module attributes {stable_mosaic.version = 11 : i64} {
  func.func @_copy_kernel(%arg0: i32, %arg1: memref<8x256xf32, #tpu.memory_space<vmem>>, %arg2: memref<8x256xf32, #tpu.memory_space<vmem>>) attributes {dimension_semantics = [#tpu.dimension_semantics<parallel>], iteration_bounds = array<i64: 1>, scalar_prefetch = 0 : i64, scratch_operands = 0 : i64, tpu.core_type = #tpu.core_type<tc>, window_params = [{transform_indices = @transform_0, window_bounds = array<i64: 8, 256>}, {transform_indices = @transform_1, window_bounds = array<i64: 8, 256>}]} {
    %c0 = arith.constant 0 : index
    %c0_0 = arith.constant 0 : index
    %0 = vector.load %arg1[%c0, %c0_0] : memref<8x256xf32, #tpu.memory_space<vmem>>, vector<8x256xf32>
    %c0_1 = arith.constant 0 : index
    %c0_2 = arith.constant 0 : index
    %1 = vector.load %arg2[%c0_1, %c0_2] : memref<8x256xf32, #tpu.memory_space<vmem>>, vector<8x256xf32>
    tpu.vector_store %arg2[%c0_1, %c0_2], %0 {strides = array<i32>} : memref<8x256xf32, #tpu.memory_space<vmem>>, vector<8x256xf32>,
    return
  }
  func.func @transform_0(%arg0: i32) -> (i32, i32) {
    %c0_i32 = arith.constant 0 : i32
    %c0_i32_0 = arith.constant 0 : i32
    return %arg0, %c0_i32 : i32, i32
  }
  func.func @transform_1(%arg0: i32) -> (i32, i32) {
    %c0_i32 = arith.constant 0 : i32
    %c0_i32_0 = arith.constant 0 : i32
    return %arg0, %c0_i32 : i32, i32
  }
}

</mosaic_0001>

<llo_original>
// kernel: tpu_custom_call.1
$region0: #{tpu_custom_call.1}
  #allocation0 [shape = 'u32[]', space=smem, size = 0x4, offset = 0x4, fixed_abs, tag = 'smem constant byte address 0x4 - core index']
  #allocation1 [shape = 'u32[72,128]{1,0:T(1,128)}', space=vmem, size = 0x9000, scoped, tag = 'internal scratch']
  %s0 = inlined_call_operand.hbm [shape: f32[8,256], index: 0, kind: input, shape index: {}, may-alias: {0,1}]
  %s1 = inlined_call_operand.hbm [shape: f32[8,256], index: 1, kind: output, shape index: {}, may-alias: {0,1}]
  %s2 = sld [smem:[#allocation0]]
  $region18: #{tpu_custom_call.1} parent=0
    _
  %s4 = ssub.s32 1, %s2
  %s5 = scalar_select 0, %s4, %s2
  $region1: #{tpu_custom_call.1} parent=0
    #allocation2 [shape = 'u8[8192]{0}', space=vmem, size = 0x2000, scoped, tag = 'input window, operand 0, single buffered']
    #allocation3 [shape = 's32[1]{0}', space=sflag, size = 0x4, scoped, tag = 'scoped memory for tpu_custom_call.1']
    #allocation4 [shape = 's32[1]{0}', space=sflag, size = 0x4, scoped, tag = 'scoped memory for tpu_custom_call.1']
    #allocation5 [shape = 'u8[8192]{0}', space=vmem, size = 0x2000, scoped, tag = 'output window, operand 0, single buffered']
    %6 = vsyncpa [#allocation3], 0
    %7 = vsyncpa [#allocation4], 0
    // Predicated region
    $region2: #{tpu_custom_call.1} parent=1 // pred_check
      _
    $region3: #{tpu_custom_call.1} parent=1 // pred_check_branch
      %9 = sbr.rel (0) target = $region5
    $region4: #{tpu_custom_call.1} parent=1 // pred_region
      %11 = vsyncadd [#allocation3], 0
      %s13 = sshll.u32 %s0, 4
      %s14 = int_to_ptr.hbm [resolvable:$true] %s13
      %s15 = sshll.u32 [#allocation2], 4
      %s16 = int_to_ptr.vmem [resolvable:$true] %s15
      %18 = dma.hbm_to_vmem [thread:$0]  %s14, 256, %s16, [#allocation3]
    $region5: #{tpu_custom_call.1} parent=1 // pred_fallthru
      _
    // Predicated region
    $region6: #{tpu_custom_call.1} parent=1 // pred_check
      _
    $region7: #{tpu_custom_call.1} parent=1 // pred_check_branch
      %20 = sbr.rel (0) target = $region9
    $region8: #{tpu_custom_call.1} parent=1 // pred_region
      %22 = dma.done [#allocation3], 256
    $region9: #{tpu_custom_call.1} parent=1 // pred_fallthru
      _
    %v23 = vld [vmem:[#allocation2] sm:$0xff]
    %v24 = vld [vmem:[#allocation2 + $0x8] sm:$0xff]
    %25 = vst [vmem:[#allocation5] sm:$0xff] %v23
    %26 = vst [vmem:[#allocation5 + $0x8] sm:$0xff] %v24
    // Predicated region
    $region10: #{tpu_custom_call.1} parent=1 // pred_check
      _
    $region11: #{tpu_custom_call.1} parent=1 // pred_check_branch
      %28 = sbr.rel (0) target = $region13
    $region12: #{tpu_custom_call.1} parent=1 // pred_region
      %30 = vsyncadd [#allocation4], 0
      %s32 = sshll.u32 [#allocation5], 4
      %s33 = int_to_ptr.vmem [resolvable:$true] %s32
      %s34 = sshll.u32 %s1, 4
      %s35 = int_to_ptr.hbm [resolvable:$true] %s34
      %37 = dma.vmem_to_hbm [thread:$0]  %s33, 256, %s35, [#allocation4]
    $region13: #{tpu_custom_call.1} parent=1 // pred_fallthru
      _
    // Predicated region
    $region14: #{tpu_custom_call.1} parent=1 // pred_check
      _
    $region15: #{tpu_custom_call.1} parent=1 // pred_check_branch
      %39 = sbr.rel (0) target = $region17
    $region16: #{tpu_custom_call.1} parent=1 // pred_region
      %41 = dma.done [#allocation4], 256
    $region17: #{tpu_custom_call.1} parent=1 // pred_fallthru
      _
    %42 = vsyncpa [#allocation3], 1
    %43 = vsyncpa [#allocation4], 1

</llo_original>
